<compile_context>
chip_gen: v6e
topology: v6e:2x2x1
jax: 0.10.0
libtpu: 0.0.40
codegen_flags: <defaults>
</compile_context>

<pallas_src>
import functools

import jax
import jax.numpy as jnp
from jax.experimental import pallas as pl
from jax.experimental.pallas import tpu as pltpu

_SUBLANE = 8
_LANE = 128
_RESIDENT_VMEM_BUDGET = 40 << 20     # v7x-safe: 64 MiB physical VMEM, leave headroom
_VMEM_LIMIT_CAP = 48 << 20           # never ask the compiler for more than this
_MAX_ONEHOT_NODES = 2048             # beyond this the one-hot gather flops/VMEM blow up


def _round_up(x, m):
    return ((x + m - 1) // m) * m


def _padded_bytes(rows, cols, itemsize):
    """Approx VMEM footprint of a (rows, cols) tile after (8, 128) layout padding."""
    return (_round_up(max(int(rows), 1), _SUBLANE)
            * _round_up(max(int(cols), 1), _LANE) * itemsize)


def _edge_mlp_gather_kernel(src_ref, dst_ref, h_ref, w1s_ref, w1d_ref, b1_ref,
                            w2_ref, b2_ref, out_ref, *, n_pad, out_is_scalar):
    """In-kernel endpoint gather (one-hot MXU) + fused-concat 2-layer MLP.

    src/dst: (TILE_E, 1) int32     h: (N_pad, H) act dtype (VMEM resident)
    w1s/w1d: (H, H) act dtype      b1: (1, H) f32
    w2: (1, H) f32 [O==1] or (H, O) act dtype      b2: (1, O) f32
    out: (TILE_E, O) f32
    """
    te = src_ref.shape[0]
    act_dtype = h_ref.dtype
    node_iota = jax.lax.broadcasted_iota(jnp.int32, (te, n_pad), 1)
    # One-hot row selectors.  onehot @ h on the MXU is an exact row gather
    # (exactly one nonzero per row -> no accumulation error).
    oh_src = jnp.where(src_ref[...] == node_iota, 1.0, 0.0).astype(act_dtype)
    oh_dst = jnp.where(dst_ref[...] == node_iota, 1.0, 0.0).astype(act_dtype)
    h_src = jnp.dot(oh_src, h_ref[...],
                    preferred_element_type=jnp.float32).astype(act_dtype)
    h_dst = jnp.dot(oh_dst, h_ref[...],
                    preferred_element_type=jnp.float32).astype(act_dtype)

    # concat fused away: W1 split host-side into its src / dst halves.
    h1 = (jnp.dot(h_src, w1s_ref[...], preferred_element_type=jnp.float32)
          + jnp.dot(h_dst, w1d_ref[...], preferred_element_type=jnp.float32)
          + b1_ref[...])
    h1 = jnp.maximum(h1, 0.0)                                     # ReLU (VPU, f32)

    if out_is_scalar:
        # out_feats == 1: VPU multiply + cross-lane reduce instead of a 1-lane MXU dot.
        score = jnp.sum(h1 * w2_ref[...], axis=-1, keepdims=True) + b2_ref[...]
    else:
        # bf16 MXU operands, f32 accumulate (review correctness note #3).
        score = jnp.dot(h1.astype(w2_ref.dtype), w2_ref[...],
                        preferred_element_type=jnp.float32) + b2_ref[...]
    out_ref[...] = score.astype(out_ref.dtype)


def _edge_mlp_pregathered_kernel(hsrc_ref, hdst_ref, w1s_ref, w1d_ref, b1_ref,
                                 w2_ref, b2_ref, out_ref, *, out_is_scalar):
    """Fallback path: h_src / h_dst gathered host-side (node table too big for VMEM)."""
    h1 = (jnp.dot(hsrc_ref[...], w1s_ref[...], preferred_element_type=jnp.float32)
          + jnp.dot(hdst_ref[...], w1d_ref[...], preferred_element_type=jnp.float32)
          + b1_ref[...])
    h1 = jnp.maximum(h1, 0.0)
    if out_is_scalar:
        score = jnp.sum(h1 * w2_ref[...], axis=-1, keepdims=True) + b2_ref[...]
    else:
        score = jnp.dot(h1.astype(w2_ref.dtype), w2_ref[...],
                        preferred_element_type=jnp.float32) + b2_ref[...]
    out_ref[...] = score.astype(out_ref.dtype)


def mlp_predictor_forward(src_ids, dst_ids, h, w1, b1, w2, b2,
                          *, tile_e=1024, use_bf16=True, force_host_gather=False):
    """Edge scores for a graph given as (src_ids, dst_ids) index arrays.

    h:  (N, H) node features.   w1: (2H, H), b1: (H,)   [torch W1, stored (in, out)]
    w2: (H, O),  b2: (O,)                               [torch W2, stored (in, out)]
    Returns (E,) when O == 1 (matching .squeeze(1)), else (E, O).
    """
    N, H = h.shape
    twoH, H_out = w1.shape
    assert twoH == 2 * H and H_out == H, "W1 must be (2*h_feats, h_feats)"
    O = w2.shape[1]
    E = int(src_ids.shape[0])

    if E == 0:
        return jnp.zeros((0,) if O == 1 else (0, O), jnp.float32)

    in_dtype = jnp.bfloat16 if use_bf16 else jnp.float32
    act_bytes = jnp.dtype(in_dtype).itemsize

    # ---- adaptive edge tiling (review #3 / #4) ----------------------------------
    n_t = pl.cdiv(E, tile_e)
    if E > 2 * _SUBLANE:
        n_t = max(n_t, 2)        # >= 2 tiles so v7x's two TCs both get work
    te = _round_up(pl.cdiv(E, n_t), _SUBLANE)
    n_tiles = pl.cdiv(E, te)
    E_pad = n_tiles * te
    pad = E_pad - E              # pad rows gather node 0 and are sliced off below

    # ---- weights / biases (resident, constant index_maps) ------------------------
    w1_src = w1[:H].astype(in_dtype)               # (H, H)
    w1_dst = w1[H:].astype(in_dtype)               # (H, H)
    b1_2d = b1.reshape(1, H).astype(jnp.float32)
    b2_2d = b2.reshape(1, O).astype(jnp.float32)
    if O == 1:
        w2_arg = w2.reshape(1, H).astype(jnp.float32)        # VPU second layer
        w2_spec = pl.BlockSpec((1, H), lambda i: (0, 0))
        w2_bytes = H * 4
        w2_vmem = _padded_bytes(1, H, 4)
    else:
        w2_arg = w2.astype(in_dtype)                          # MXU second layer
        w2_spec = pl.BlockSpec((H, O), lambda i: (0, 0))
        w2_bytes = H * O * act_bytes
        w2_vmem = _padded_bytes(H, O, act_bytes)

    weight_specs = [
        pl.BlockSpec((H, H), lambda i: (0, 0)),    # W1[:H]
        pl.BlockSpec((H, H), lambda i: (0, 0)),    # W1[H:]
        pl.BlockSpec((1, H), lambda i: (0, 0)),    # b1
        w2_spec,                                   # W2
        pl.BlockSpec((1, O), lambda i: (0, 0)),    # b2
    ]
    weight_args = (w1_src, w1_dst, b1_2d, w2_arg, b2_2d)
    # Constant-index_map inputs still get the default 2 pipeline buffers.
    weights_vmem = 2 * (2 * _padded_bytes(H, H, act_bytes) + _padded_bytes(1, H, 4)
                        + w2_vmem + _padded_bytes(1, O, 4))

    N_pad = _round_up(N, _SUBLANE)

    # ---- VMEM budget for the resident-table / in-kernel gather path (review #2) --
    gather_vmem = (_padded_bytes(N_pad, H, act_bytes) * 2          # node table (buffers)
                   + 2 * 2 * _padded_bytes(te, 1, 4)               # src+dst idx, dbl-buf
                   + 2 * _padded_bytes(te, O, 4)                   # output, dbl-buf
                   + 2 * _padded_bytes(te, N_pad, 4)               # one-hot intermediates
                   + 3 * _padded_bytes(te, H, 4)                   # gathered rows + h1
                   + weights_vmem)
    use_in_kernel_gather = ((not force_host_gather)
                            and gather_vmem <= _RESIDENT_VMEM_BUDGET
                            and N_pad <= _MAX_ONEHOT_NODES)

    if use_in_kernel_gather:
        h_tab = h.astype(in_dtype)
        if N_pad > N:
            h_tab = jnp.pad(h_tab, ((0, N_pad - N), (0, 0)))
        src_col = jnp.pad(src_ids.astype(jnp.int32), (0, pad)).reshape(E_pad, 1)
        dst_col = jnp.pad(dst_ids.astype(jnp.int32), (0, pad)).reshape(E_pad, 1)

        kernel = functools.partial(_edge_mlp_gather_kernel,
                                   n_pad=N_pad, out_is_scalar=(O == 1))
        cost = pl.CostEstimate(
            flops=4 * E_pad * N_pad * H + 4 * E_pad * H * H + 2 * E_pad * H * O,
            transcendentals=0,
            bytes_accessed=(2 * E_pad * 4                          # index streams
                            + E_pad * O * 4                        # output
                            + N_pad * H * act_bytes                # node table (once)
                            + 2 * H * H * act_bytes + w2_bytes + (H + O) * 4),
        )
        vmem_limit = int(min(max(2 * gather_vmem, 16 << 20), _VMEM_LIMIT_CAP))
        out = pl.pallas_call(
            kernel,
            out_shape=jax.ShapeDtypeStruct((E_pad, O), jnp.float32),
            grid=(n_tiles,),
            in_specs=[
                pl.BlockSpec((te, 1), lambda i: (i, 0)),           # src idx tile
                pl.BlockSpec((te, 1), lambda i: (i, 0)),           # dst idx tile
                pl.BlockSpec((N_pad, H), lambda i: (0, 0)),        # node table (resident)
            ] + weight_specs,
            out_specs=pl.BlockSpec((te, O), lambda i: (i, 0)),
            compiler_params=pltpu.CompilerParams(
                dimension_semantics=("parallel",),                 # independent edge tiles
                vmem_limit_bytes=vmem_limit),
            cost_estimate=cost,
        )(src_col, dst_col, h_tab, *weight_args)
    else:
        # ---- fallback: host-side gather (node table too large for VMEM) ----------
        h_c = h.astype(in_dtype)
        src_p = jnp.pad(src_ids, (0, pad))
        dst_p = jnp.pad(dst_ids, (0, pad))
        h_src = h_c[src_p]                                         # (E_pad, H)
        h_dst = h_c[dst_p]                                         # (E_pad, H)

        kernel = functools.partial(_edge_mlp_pregathered_kernel,
                                   out_is_scalar=(O == 1))
        host_vmem = (2 * 2 * _padded_bytes(te, H, act_bytes)
                     + 2 * _padded_bytes(te, O, 4)
                     + 3 * _padded_bytes(te, H, 4)
                     + weights_vmem)
        cost = pl.CostEstimate(
            flops=4 * E_pad * H * H + 2 * E_pad * H * O,
            transcendentals=0,
            # Charge the host gather's HBM write + kernel re-read (review #10).
            bytes_accessed=(4 * E_pad * H * act_bytes
                            + E_pad * O * 4
                            + 2 * H * H * act_bytes + w2_bytes + (H + O) * 4),
        )
        vmem_limit = int(min(max(2 * host_vmem, 16 << 20), _VMEM_LIMIT_CAP))
        out = pl.pallas_call(
            kernel,
            out_shape=jax.ShapeDtypeStruct((E_pad, O), jnp.float32),
            grid=(n_tiles,),
            in_specs=[
                pl.BlockSpec((te, H), lambda i: (i, 0)),           # h_src tile
                pl.BlockSpec((te, H), lambda i: (i, 0)),           # h_dst tile
            ] + weight_specs,
            out_specs=pl.BlockSpec((te, O), lambda i: (i, 0)),
            compiler_params=pltpu.CompilerParams(
                dimension_semantics=("parallel",),
                vmem_limit_bytes=vmem_limit),
            cost_estimate=cost,
        )(h_src, h_dst, *weight_args)

    scores = out[:E]
    if O == 1:
        scores = scores[:, 0]                                      # torch .squeeze(1)
    return scores


def _reference(src_ids, dst_ids, h, w1, b1, w2, b2, use_bf16=True):
    # Pure-JAX reference with the same bf16 MXU-operand rounding as the kernel.
    O = w2.shape[1]
    hf, w1f, w2f = h, w1, w2
    if use_bf16:
        hf = h.astype(jnp.bfloat16).astype(jnp.float32)
        w1f = w1.astype(jnp.bfloat16).astype(jnp.float32)
    hcat = jnp.concatenate([hf[src_ids], hf[dst_ids]], axis=1)
    z = jnp.maximum(hcat @ w1f + b1, 0.0)
    if O > 1 and use_bf16:
        z = z.astype(jnp.bfloat16).astype(jnp.float32)
        w2f = w2.astype(jnp.bfloat16).astype(jnp.float32)
    out = z @ w2f + b2
    return out[:, 0] if O == 1 else out


if __name__ == "__main__":
    key = jax.random.PRNGKey(0)
    (k_h, k_w1, k_b1, k_w2, k_b2, k_s1, k_d1, k_s2, k_d2, k_s3, k_d3,
     k_w2b, k_b2b) = jax.random.split(key, 13)

    num_nodes, h_feats = 6, 32
    h = jax.random.normal(k_h, (num_nodes, h_feats), dtype=jnp.float32)

    # torch Linear weights stored transposed as (in, out) so y = x @ W + b.
    w1 = jax.random.normal(k_w1, (2 * h_feats, h_feats), dtype=jnp.float32) * 0.1
    b1 = jax.random.normal(k_b1, (h_feats,), dtype=jnp.float32) * 0.1
    w2 = jax.random.normal(k_w2, (h_feats, 1), dtype=jnp.float32) * 0.1
    b2 = jax.random.normal(k_b2, (1,), dtype=jnp.float32) * 0.1

    # --- test 1: small graph, out_feats = 1 (single tile, in-kernel gather) ---
    E1 = 8
    src1 = jax.random.randint(k_s1, (E1,), 0, num_nodes)
    dst1 = jax.random.randint(k_d1, (E1,), 0, num_nodes)
    s1 = jax.block_until_ready(mlp_predictor_forward(src1, dst1, h, w1, b1, w2, b2))
    r1 = _reference(src1, dst1, h, w1, b1, w2, b2)
    assert s1.shape == (E1,)
    assert jnp.allclose(s1, r1, atol=1e-3, rtol=1e-3)

    # --- test 2: larger edge count, exercises 2-tile grid + small tail padding ---
    E2 = 600
    src2 = jax.random.randint(k_s2, (E2,), 0, num_nodes)
    dst2 = jax.random.randint(k_d2, (E2,), 0, num_nodes)
    s2 = jax.block_until_ready(mlp_predictor_forward(src2, dst2, h, w1, b1, w2, b2))
    r2 = _reference(src2, dst2, h, w1, b1, w2, b2)
    assert s2.shape == (E2,)
    assert jnp.allclose(s2, r2, atol=1e-3, rtol=1e-3)

    # --- test 3: out_feats > 1 (general MXU second-layer path, no squeeze) ---
    E3, O3 = 16, 2
    w2b = jax.random.normal(k_w2b, (h_feats, O3), dtype=jnp.float32) * 0.1
    b2b = jax.random.normal(k_b2b, (O3,), dtype=jnp.float32) * 0.1
    src3 = jax.random.randint(k_s3, (E3,), 0, num_nodes)
    dst3 = jax.random.randint(k_d3, (E3,), 0, num_nodes)
    s3 = jax.block_until_ready(mlp_predictor_forward(src3, dst3, h, w1, b1, w2b, b2b))
    r3 = _reference(src3, dst3, h, w1, b1, w2b, b2b)
    assert s3.shape == (E3, O3)
    assert jnp.allclose(s3, r3, atol=2e-3, rtol=2e-3)

    # --- test 4: force the host-gather fallback path (large-N escape hatch) ---
    s4 = jax.block_until_ready(
        mlp_predictor_forward(src2, dst2, h, w1, b1, w2, b2, force_host_gather=True))
    assert s4.shape == (E2,)
    assert jnp.allclose(s4, r2, atol=1e-3, rtol=1e-3)

    print("KERNEL_OK")
</pallas_src>

<mosaic_0001>
module attributes {stable_mosaic.version = 11 : i64} {
  func.func @_edge_mlp_gather_kernel(%arg0: i32, %arg1: memref<8x1xi32, #tpu.memory_space<vmem>>, %arg2: memref<8x1xi32, #tpu.memory_space<vmem>>, %arg3: memref<8x32xbf16, #tpu.memory_space<vmem>>, %arg4: memref<32x32xbf16, #tpu.memory_space<vmem>>, %arg5: memref<32x32xbf16, #tpu.memory_space<vmem>>, %arg6: memref<1x32xf32, #tpu.memory_space<vmem>>, %arg7: memref<1x32xf32, #tpu.memory_space<vmem>>, %arg8: memref<1x1xf32, #tpu.memory_space<vmem>>, %arg9: memref<8x1xf32, #tpu.memory_space<vmem>>) attributes {dimension_semantics = [#tpu.dimension_semantics<parallel>], iteration_bounds = array<i64: 1>, scalar_prefetch = 0 : i64, scratch_operands = 0 : i64, tpu.core_type = #tpu.core_type<tc>, window_params = [{transform_indices = @transform_0, window_bounds = array<i64: 8, 1>}, {transform_indices = @transform_1, window_bounds = array<i64: 8, 1>}, {pipeline_mode = #tpu.pipeline_mode<synchronous>, transform_indices = @transform_2, window_bounds = array<i64: 8, 32>}, {pipeline_mode = #tpu.pipeline_mode<synchronous>, transform_indices = @transform_3, window_bounds = array<i64: 32, 32>}, {pipeline_mode = #tpu.pipeline_mode<synchronous>, transform_indices = @transform_4, window_bounds = array<i64: 32, 32>}, {pipeline_mode = #tpu.pipeline_mode<synchronous>, transform_indices = @transform_5, window_bounds = array<i64: 1, 32>}, {pipeline_mode = #tpu.pipeline_mode<synchronous>, transform_indices = @transform_6, window_bounds = array<i64: 1, 32>}, {pipeline_mode = #tpu.pipeline_mode<synchronous>, transform_indices = @transform_7, window_bounds = array<i64: 1, 1>}, {transform_indices = @transform_8, window_bounds = array<i64: 8, 1>}]} {
    %0 = tpu.iota {dimensions = array<i32: 1>} : vector<8x8xi32>
    %c0 = arith.constant 0 : index
    %c0_0 = arith.constant 0 : index
    %1 = vector.load %arg1[%c0, %c0_0] : memref<8x1xi32, #tpu.memory_space<vmem>>, vector<8x1xi32>
    %2 = vector.broadcast %1 : vector<8x1xi32> to vector<8x8xi32>
    %3 = arith.cmpi eq, %2, %0 : vector<8x8xi32>
    %cst = arith.constant 1.000000e+00 : f32
    %cst_1 = arith.constant 0.000000e+00 : f32
    %4 = vector.broadcast %cst : f32 to vector<8x8xf32>
    %5 = vector.broadcast %cst_1 : f32 to vector<8x8xf32>
    %6 = arith.select %3, %4, %5 : vector<8x8xi1>, vector<8x8xf32>
    %7 = arith.truncf %6 : vector<8x8xf32> to vector<8x8xbf16>
    %c0_2 = arith.constant 0 : index
    %c0_3 = arith.constant 0 : index
    %8 = vector.load %arg2[%c0_2, %c0_3] : memref<8x1xi32, #tpu.memory_space<vmem>>, vector<8x1xi32>
    %9 = vector.broadcast %8 : vector<8x1xi32> to vector<8x8xi32>
    %10 = arith.cmpi eq, %9, %0 : vector<8x8xi32>
    %cst_4 = arith.constant 1.000000e+00 : f32
    %cst_5 = arith.constant 0.000000e+00 : f32
    %11 = vector.broadcast %cst_4 : f32 to vector<8x8xf32>
    %12 = vector.broadcast %cst_5 : f32 to vector<8x8xf32>
    %13 = arith.select %10, %11, %12 : vector<8x8xi1>, vector<8x8xf32>
    %14 = arith.truncf %13 : vector<8x8xf32> to vector<8x8xbf16>
    %c0_6 = arith.constant 0 : index
    %c0_7 = arith.constant 0 : index
    %15 = vector.load %arg3[%c0_6, %c0_7] : memref<8x32xbf16, #tpu.memory_space<vmem>>, vector<8x32xbf16>
    %cst_8 = arith.constant dense<0.000000e+00> : vector<8x32xf32>
    %16 = tpu.matmul %7, %15, %cst_8 {dimension_numbers = #tpu.dot_dimension_numbers<[1], [0], [0], [1], [0, 0, 1, 1], [], []>} : vector<8x8xbf16>, vector<8x32xbf16>, vector<8x32xf32> -> vector<8x32xf32>
    %17 = arith.truncf %16 : vector<8x32xf32> to vector<8x32xbf16>
    %c0_9 = arith.constant 0 : index
    %c0_10 = arith.constant 0 : index
    %18 = vector.load %arg3[%c0_9, %c0_10] : memref<8x32xbf16, #tpu.memory_space<vmem>>, vector<8x32xbf16>
    %cst_11 = arith.constant dense<0.000000e+00> : vector<8x32xf32>
    %19 = tpu.matmul %14, %18, %cst_11 {dimension_numbers = #tpu.dot_dimension_numbers<[1], [0], [0], [1], [0, 0, 1, 1], [], []>} : vector<8x8xbf16>, vector<8x32xbf16>, vector<8x32xf32> -> vector<8x32xf32>
    %20 = arith.truncf %19 : vector<8x32xf32> to vector<8x32xbf16>
    %c0_12 = arith.constant 0 : index
    %c0_13 = arith.constant 0 : index
    %21 = vector.load %arg4[%c0_12, %c0_13] : memref<32x32xbf16, #tpu.memory_space<vmem>>, vector<32x32xbf16>
    %cst_14 = arith.constant dense<0.000000e+00> : vector<8x32xf32>
    %22 = tpu.matmul %17, %21, %cst_14 {dimension_numbers = #tpu.dot_dimension_numbers<[1], [0], [0], [1], [0, 0, 1, 1], [], []>} : vector<8x32xbf16>, vector<32x32xbf16>, vector<8x32xf32> -> vector<8x32xf32>
    %c0_15 = arith.constant 0 : index
    %c0_16 = arith.constant 0 : index
    %23 = vector.load %arg5[%c0_15, %c0_16] : memref<32x32xbf16, #tpu.memory_space<vmem>>, vector<32x32xbf16>
    %cst_17 = arith.constant dense<0.000000e+00> : vector<8x32xf32>
    %24 = tpu.matmul %20, %23, %cst_17 {dimension_numbers = #tpu.dot_dimension_numbers<[1], [0], [0], [1], [0, 0, 1, 1], [], []>} : vector<8x32xbf16>, vector<32x32xbf16>, vector<8x32xf32> -> vector<8x32xf32>
    %25 = arith.addf %22, %24 : vector<8x32xf32>
    %c0_18 = arith.constant 0 : index
    %c0_19 = arith.constant 0 : index
    %26 = vector.load %arg6[%c0_18, %c0_19] : memref<1x32xf32, #tpu.memory_space<vmem>>, vector<1x32xf32>
    %27 = vector.broadcast %26 : vector<1x32xf32> to vector<8x32xf32>
    %28 = arith.addf %25, %27 : vector<8x32xf32>
    %cst_20 = arith.constant 0.000000e+00 : f32
    %29 = vector.broadcast %cst_20 : f32 to vector<8x32xf32>
    %30 = arith.maximumf %28, %29 : vector<8x32xf32>
    %c0_21 = arith.constant 0 : index
    %c0_22 = arith.constant 0 : index
    %31 = vector.load %arg7[%c0_21, %c0_22] : memref<1x32xf32, #tpu.memory_space<vmem>>, vector<1x32xf32>
    %32 = vector.broadcast %31 : vector<1x32xf32> to vector<8x32xf32>
    %33 = arith.mulf %30, %32 : vector<8x32xf32>
    %cst_23 = arith.constant dense<0.000000e+00> : vector<8xf32>
    %34 = vector.multi_reduction <add>, %33, %cst_23 [1] : vector<8x32xf32> to vector<8xf32>
    %35 = vector.shape_cast %34 : vector<8xf32> to vector<8x1xf32>
    %c0_24 = arith.constant 0 : index
    %c0_25 = arith.constant 0 : index
    %36 = vector.load %arg8[%c0_24, %c0_25] : memref<1x1xf32, #tpu.memory_space<vmem>>, vector<1x1xf32>
    %37 = vector.broadcast %36 : vector<1x1xf32> to vector<8x1xf32>
    %38 = arith.addf %35, %37 : vector<8x1xf32>
    %c0_26 = arith.constant 0 : index
    %c0_27 = arith.constant 0 : index
    %39 = vector.load %arg9[%c0_26, %c0_27] : memref<8x1xf32, #tpu.memory_space<vmem>>, vector<8x1xf32>
    tpu.vector_store %arg9[%c0_26, %c0_27], %38 {strides = array<i32>} : memref<8x1xf32, #tpu.memory_space<vmem>>, vector<8x1xf32>,
    return
  }
  func.func @transform_0(%arg0: i32) -> (i32, i32) {
    %c0_i32 = arith.constant 0 : i32
    %c0_i32_0 = arith.constant 0 : i32
    return %arg0, %c0_i32 : i32, i32
  }
  func.func @transform_1(%arg0: i32) -> (i32, i32) {
    %c0_i32 = arith.constant 0 : i32
    %c0_i32_0 = arith.constant 0 : i32
    return %arg0, %c0_i32 : i32, i32
  }
  func.func @transform_2(%arg0: i32) -> (i32, i32) {
    %c0_i32 = arith.constant 0 : i32
    %c0_i32_0 = arith.constant 0 : i32
    %c0_i32_1 = arith.constant 0 : i32
    return %c0_i32, %c0_i32_0 : i32, i32
  }
  func.func @transform_3(%arg0: i32) -> (i32, i32) {
    %c0_i32 = arith.constant 0 : i32
    %c0_i32_0 = arith.constant 0 : i32
    %c0_i32_1 = arith.constant 0 : i32
    return %c0_i32, %c0_i32_0 : i32, i32
  }
  func.func @transform_4(%arg0: i32) -> (i32, i32) {
    %c0_i32 = arith.constant 0 : i32
    %c0_i32_0 = arith.constant 0 : i32
    %c0_i32_1 = arith.constant 0 : i32
    return %c0_i32, %c0_i32_0 : i32, i32
  }
  func.func @transform_5(%arg0: i32) -> (i32, i32) {
    %c0_i32 = arith.constant 0 : i32
    %c0_i32_0 = arith.constant 0 : i32
    %c0_i32_1 = arith.constant 0 : i32
    return %c0_i32, %c0_i32_0 : i32, i32
  }
  func.func @transform_6(%arg0: i32) -> (i32, i32) {
    %c0_i32 = arith.constant 0 : i32
    %c0_i32_0 = arith.constant 0 : i32
    %c0_i32_1 = arith.constant 0 : i32
    return %c0_i32, %c0_i32_0 : i32, i32
  }
  func.func @transform_7(%arg0: i32) -> (i32, i32) {
    %c0_i32 = arith.constant 0 : i32
    %c0_i32_0 = arith.constant 0 : i32
    %c0_i32_1 = arith.constant 0 : i32
    return %c0_i32, %c0_i32_0 : i32, i32
  }
  func.func @transform_8(%arg0: i32) -> (i32, i32) {
    %c0_i32 = arith.constant 0 : i32
    %c0_i32_0 = arith.constant 0 : i32
    return %arg0, %c0_i32 : i32, i32
  }
}

</mosaic_0001>

<llo_original>
// kernel: tpu_custom_call.1
$region0: #{tpu_custom_call.1}
  #allocation0 [shape = 'u32[]', space=smem, size = 0x4, offset = 0x4, fixed_abs, tag = 'smem constant byte address 0x4 - core index']
  #allocation1 [shape = 'u32[144,128]{1,0:T(1,128)}', space=vmem, size = 0x12000, scoped, tag = 'internal scratch']
  #allocation2 [shape = 'f32[1,1]{1,0:T(1,128)S(1)}', space=vmem, size = 0x200, scoped, tag = 'scoped memory for tpu_custom_call.1']
  %s0 = inlined_call_operand.vmem [shape: s32[8,1], index: 0, kind: input, shape index: {}]
  %s1 = inlined_call_operand.vmem [shape: s32[8,1], index: 1, kind: input, shape index: {}]
  %s2 = inlined_call_operand.vmem [shape: bf16[8,32], index: 2, kind: input, shape index: {}]
  %s3 = inlined_call_operand.vmem [shape: bf16[32,32], index: 3, kind: input, shape index: {}]
  %s4 = inlined_call_operand.hbm [shape: bf16[32,32], index: 4, kind: input, shape index: {}]
  %s5 = inlined_call_operand.vmem [shape: f32[1,32], index: 5, kind: input, shape index: {}]
  %s6 = inlined_call_operand.vmem [shape: f32[1,32], index: 6, kind: input, shape index: {}]
  %s7 = inlined_call_operand.<no memory space> [shape: f32[1,1], index: 7, kind: input, shape index: {}]
  %s8 = inlined_call_operand.vmem [shape: f32[8,1], index: 8, kind: output, shape index: {}]
  %s9 = sld [smem:[#allocation0]]
  $region46: #{tpu_custom_call.1} parent=0
    _
  %s11 = ssub.s32 1, %s9
  %s12 = scalar_select 0, %s11, %s9
  %v13 = vstv %s7
  %14 = vst [vmem:[#allocation2] sm:$0x1] %v13
  $region1: #{tpu_custom_call.1} parent=0
    #allocation3 [shape = 'u8[8192]{0}', space=vmem, size = 0x2000, scoped, tag = 'input window, operand 4, single buffered']
    #allocation4 [shape = 's32[1]{0}', space=sflag, size = 0x4, scoped, tag = 'scoped memory for tpu_custom_call.1']
    %15 = vsyncpa [#allocation4], 0
    // Predicated region
    $region2: #{tpu_custom_call.1} parent=1 // pred_check
      _
    $region3: #{tpu_custom_call.1} parent=1 // pred_check_branch
      %17 = sbr.rel (0) target = $region5
    $region4: #{tpu_custom_call.1} parent=1 // pred_region
      _
    $region5: #{tpu_custom_call.1} parent=1 // pred_fallthru
      _
    // Predicated region
    $region6: #{tpu_custom_call.1} parent=1 // pred_check
      _
    $region7: #{tpu_custom_call.1} parent=1 // pred_check_branch
      %19 = sbr.rel (0) target = $region9
    $region8: #{tpu_custom_call.1} parent=1 // pred_region
      _
    $region9: #{tpu_custom_call.1} parent=1 // pred_fallthru
      _
    // Predicated region
    $region10: #{tpu_custom_call.1} parent=1 // pred_check
      _
    $region11: #{tpu_custom_call.1} parent=1 // pred_check_branch
      %21 = sbr.rel (0) target = $region13
    $region12: #{tpu_custom_call.1} parent=1 // pred_region
      _
    $region13: #{tpu_custom_call.1} parent=1 // pred_fallthru
      _
    // Predicated region
    $region14: #{tpu_custom_call.1} parent=1 // pred_check
      _
    $region15: #{tpu_custom_call.1} parent=1 // pred_check_branch
      %23 = sbr.rel (0) target = $region17
    $region16: #{tpu_custom_call.1} parent=1 // pred_region
      _
    $region17: #{tpu_custom_call.1} parent=1 // pred_fallthru
      _
    // Predicated region
    $region18: #{tpu_custom_call.1} parent=1 // pred_check
      _
    $region19: #{tpu_custom_call.1} parent=1 // pred_check_branch
      %25 = sbr.rel (0) target = $region21
    $region20: #{tpu_custom_call.1} parent=1 // pred_region
      %s27 = ssub.s32 256, 256
      %28 = vsyncadd [#allocation4], %s27
      %s29 = sshll.u32 [#allocation3], 4
      %s30 = int_to_ptr.vmem [resolvable:$true] %s29
      %35 = dma.hbm_to_vmem [thread:$0]  %s4, 256, %s30, [#allocation4], 64, 64, 4
    $region21: #{tpu_custom_call.1} parent=1 // pred_fallthru
      _
    // Predicated region
    $region22: #{tpu_custom_call.1} parent=1 // pred_check
      _
    $region23: #{tpu_custom_call.1} parent=1 // pred_check_branch
      %37 = sbr.rel (0) target = $region25
    $region24: #{tpu_custom_call.1} parent=1 // pred_region
      _
    $region25: #{tpu_custom_call.1} parent=1 // pred_fallthru
      _
    // Predicated region
    $region26: #{tpu_custom_call.1} parent=1 // pred_check
      _
    $region27: #{tpu_custom_call.1} parent=1 // pred_check_branch
      %39 = sbr.rel (0) target = $region29
    $region28: #{tpu_custom_call.1} parent=1 // pred_region
      _
    $region29: #{tpu_custom_call.1} parent=1 // pred_fallthru
      _
    // Predicated region
    $region30: #{tpu_custom_call.1} parent=1 // pred_check
      _
    $region31: #{tpu_custom_call.1} parent=1 // pred_check_branch
      %41 = sbr.rel (0) target = $region33
    $region32: #{tpu_custom_call.1} parent=1 // pred_region
      _
    $region33: #{tpu_custom_call.1} parent=1 // pred_fallthru
      _
    // Predicated region
    $region34: #{tpu_custom_call.1} parent=1 // pred_check
      _
    $region35: #{tpu_custom_call.1} parent=1 // pred_check_branch
      %43 = sbr.rel (0) target = $region37
    $region36: #{tpu_custom_call.1} parent=1 // pred_region
      %44 = dma.done [#allocation4], 256
    $region37: #{tpu_custom_call.1} parent=1 // pred_fallthru
      _
    %v46 = vlaneseq
    %v47 = vand.u32 %v46, 127
    %v48 = vld [vmem:[%s0] sm:$0xff]
    %49 = vset.pattern.permute.xlu0 0
    %50 = vperm.xlu0 %49, %v48
    %v51 = vpop.permute.xlu0 %50
    %vm52 = vcmp.eq.s32.totalorder %v51, %v47
    %v53 = vsel %vm52, 1.0, 0.0
    %v54 = vpack.c.bf16 %v53, %v53
    %v55 = vld [vmem:[%s1] sm:$0xff]
    %56 = vset.pattern.permute.xlu0 0
    %57 = vperm.xlu0 %56, %v55
    %v58 = vpop.permute.xlu0 %57
    %vm59 = vcmp.eq.s32.totalorder %v58, %v47
    %v60 = vsel %vm59, 1.0, 0.0
    %v61 = vpack.c.bf16 %v60, %v60
    %v62 = vld [vmem:[%s2] sm:$0xf]
    %vm63 = vcmask 64512
    %v65 = vsel %vm63, %v54, 0
    %vm67 = vcmask 1043456
    %v69 = vsel %vm67, %v62, 0
    %71 = vmatprep.subr.bf16.mxu0 0
    %72 = vmatpush1.bf16.msra.mxu0 0
    %73 = vmatprep.subr.bf16.mxu0 0
    %74 = vmatpush1.bf16.msra.mxu0 0
    %75 = vmatprep.subr.bf16.mxu0 0
    %76 = vmatpush1.bf16.msra.mxu0 0
    %77 = vmatprep.subr.bf16.mxu0 0
    %78 = vmatpush1.bf16.msra.mxu0 0
    %79 = vmatprep.subr.bf16.mxu0 0
    %80 = vmatpush1.bf16.msra.mxu0 0
    %81 = vmatprep.subr.bf16.mxu0 0
    %82 = vmatpush1.bf16.msra.mxu0 0
    %83 = vmatprep.subr.bf16.mxu0 0
    %84 = vmatpush1.bf16.msra.mxu0 0
    %85 = vmatprep.subr.bf16.mxu0 0
    %86 = vmatpush1.bf16.msra.mxu0 %v69
    %87 = vmatprep.subr.bf16.mxu0 0
    %88 = vmatpush2.bf16.msra.mxu0 0
    %89 = vmatprep.subr.bf16.mxu0 0
    %90 = vmatpush2.bf16.msra.mxu0 0
    %91 = vmatprep.subr.bf16.mxu0 0
    %92 = vmatpush2.bf16.msra.mxu0 0
    %93 = vmatprep.subr.bf16.mxu0 0
    %94 = vmatpush2.bf16.msra.mxu0 0
    %95 = vmatprep.subr.bf16.mxu0 0
    %96 = vmatpush2.bf16.msra.mxu0 0
    %97 = vmatprep.subr.bf16.mxu0 0
    %98 = vmatpush2.bf16.msra.mxu0 0
    %99 = vmatprep.subr.bf16.mxu0 0
    %100 = vmatpush2.bf16.msra.mxu0 0
    %101 = vmatprep.subr.bf16.mxu0 0
    %102 = vmatpush2.bf16.msra.mxu0 0
    %103 = vmatprep.mubr.bf16.mxu0 0
    %104 = vmatmul.mubr.bf16.gmra.mxu0 %v65
    %v105 = vpop.f32.mrf.mxu0
    %v106 = vadd.f32 0.0, %v105
    %v107 = vpop.f32.mrf.mxu0
    %v108 = vpop.f32.mrf.mxu0
    %v109 = vpop.f32.mrf.mxu0
    %110 = vdwg.mxu0
    %v111 = vpack.c.bf16 %v106, %v106
    %v113 = vsel %vm63, %v61, 0
    %115 = vmatprep.subr.bf16.mxu0 0
    %116 = vmatpush1.bf16.msra.mxu0 0
    %117 = vmatprep.subr.bf16.mxu0 0
    %118 = vmatpush1.bf16.msra.mxu0 0
    %119 = vmatprep.subr.bf16.mxu0 0
    %120 = vmatpush1.bf16.msra.mxu0 0
    %121 = vmatprep.subr.bf16.mxu0 0
    %122 = vmatpush1.bf16.msra.mxu0 0
    %123 = vmatprep.subr.bf16.mxu0 0
    %124 = vmatpush1.bf16.msra.mxu0 0
    %125 = vmatprep.subr.bf16.mxu0 0
    %126 = vmatpush1.bf16.msra.mxu0 0
    %127 = vmatprep.subr.bf16.mxu0 0
    %128 = vmatpush1.bf16.msra.mxu0 0
    %129 = vmatprep.subr.bf16.mxu0 0
    %130 = vmatpush1.bf16.msra.mxu0 %v69
    %131 = vmatprep.subr.bf16.mxu0 0
    %132 = vmatpush2.bf16.msra.mxu0 0
    %133 = vmatprep.subr.bf16.mxu0 0
    %134 = vmatpush2.bf16.msra.mxu0 0
    %135 = vmatprep.subr.bf16.mxu0 0
    %136 = vmatpush2.bf16.msra.mxu0 0
    %137 = vmatprep.subr.bf16.mxu0 0
    %138 = vmatpush2.bf16.msra.mxu0 0
    %139 = vmatprep.subr.bf16.mxu0 0
    %140 = vmatpush2.bf16.msra.mxu0 0
    %141 = vmatprep.subr.bf16.mxu0 0
    %142 = vmatpush2.bf16.msra.mxu0 0
    %143 = vmatprep.subr.bf16.mxu0 0
    %144 = vmatpush2.bf16.msra.mxu0 0
    %145 = vmatprep.subr.bf16.mxu0 0
    %146 = vmatpush2.bf16.msra.mxu0 0
    %147 = vmatprep.mubr.bf16.mxu0 0
    %148 = vmatmul.mubr.bf16.gmra.mxu0 %v113
    %v149 = vpop.f32.mrf.mxu0
    %v150 = vadd.f32 0.0, %v149
    %v151 = vpop.f32.mrf.mxu0
    %v152 = vpop.f32.mrf.mxu0
    %v153 = vpop.f32.mrf.mxu0
    %154 = vdwg.mxu0
    %v155 = vpack.c.bf16 %v150, %v150
    %v156 = vld [vmem:[%s3] sm:$0xf]
    %v157 = vld [vmem:[%s3 + $0x4] sm:$0xf]
    %v158 = vld [vmem:[%s3 + $0x8] sm:$0xf]
    %v159 = vld [vmem:[%s3 + $0xc] sm:$0xf]
    %v160 = vld [vmem:[#allocation3] sm:$0xf]
    %v161 = vld [vmem:[#allocation3 + $0x4] sm:$0xf]
    %v162 = vld [vmem:[#allocation3 + $0x8] sm:$0xf]
    %v163 = vld [vmem:[#allocation3 + $0xc] sm:$0xf]
    %v168 = vunpack.c.l.b16 %v160
    %v169 = vunpack.c.l.b16 %v161
    %v170 = vunpack.c.l.b16 %v162
    %v171 = vunpack.c.l.b16 %v163
    %v172 = vpack.c.b16 %v169, %v168
    %v173 = vpack.c.b16 %v171, %v170
    %vm176 = vcmask 261120
    %v178 = vsel %vm176, %v155, 0
    %180 = vmatprep.subr.bf16.mxu0 0
    %181 = vmatpush1.bf16.msra.mxu0 0
    %182 = vmatprep.subr.bf16.mxu0 0
    %183 = vmatpush1.bf16.msra.mxu0 0
    %184 = vmatprep.subr.bf16.mxu0 0
    %185 = vmatpush1.bf16.msra.mxu0 0
    %186 = vmatprep.subr.bf16.mxu0 0
    %187 = vmatpush1.bf16.msra.mxu0 0
    %188 = vmatprep.subr.bf16.mxu0 0
    %189 = vmatpush1.bf16.msra.mxu0 0
    %190 = vmatprep.subr.bf16.mxu0 0
    %191 = vmatpush1.bf16.msra.mxu0 0
    %192 = vmatprep.subr.bf16.mxu0 0
    %193 = vmatpush1.bf16.msra.mxu0 %v173
    %194 = vmatprep.subr.bf16.mxu0 0
    %195 = vmatpush1.bf16.msra.mxu0 %v172
    %196 = vmatprep.subr.bf16.mxu0 0
    %197 = vmatpush2.bf16.msra.mxu0 0
    %198 = vmatprep.subr.bf16.mxu0 0
    %199 = vmatpush2.bf16.msra.mxu0 0
    %200 = vmatprep.subr.bf16.mxu0 0
    %201 = vmatpush2.bf16.msra.mxu0 0
    %202 = vmatprep.subr.bf16.mxu0 0
    %203 = vmatpush2.bf16.msra.mxu0 0
    %204 = vmatprep.subr.bf16.mxu0 0
    %205 = vmatpush2.bf16.msra.mxu0 0
    %206 = vmatprep.subr.bf16.mxu0 0
    %207 = vmatpush2.bf16.msra.mxu0 0
    %208 = vmatprep.subr.bf16.mxu0 0
    %209 = vmatpush2.bf16.msra.mxu0 0
    %210 = vmatprep.subr.bf16.mxu0 0
    %211 = vmatpush2.bf16.msra.mxu0 0
    %212 = vmatprep.mubr.bf16.mxu0 0
    %213 = vmatmul.mubr.bf16.gmra.mxu0 %v178
    %v214 = vpop.f32.mrf.mxu0
    %v215 = vadd.f32 0.0, %v214
    %v216 = vpop.f32.mrf.mxu0
    %v217 = vpop.f32.mrf.mxu0
    %v218 = vpop.f32.mrf.mxu0
    %219 = vdwg.mxu0
    %v224 = vunpack.c.l.b16 %v156
    %v225 = vunpack.c.l.b16 %v157
    %v226 = vunpack.c.l.b16 %v158
    %v227 = vunpack.c.l.b16 %v159
    %v228 = vpack.c.b16 %v225, %v224
    %v229 = vpack.c.b16 %v227, %v226
    %v233 = vsel %vm176, %v111, 0
    %235 = vmatprep.subr.bf16.mxu0 0
    %236 = vmatpush1.bf16.msra.mxu0 0
    %237 = vmatprep.subr.bf16.mxu0 0
    %238 = vmatpush1.bf16.msra.mxu0 0
    %239 = vmatprep.subr.bf16.mxu0 0
    %240 = vmatpush1.bf16.msra.mxu0 0
    %241 = vmatprep.subr.bf16.mxu0 0
    %242 = vmatpush1.bf16.msra.mxu0 0
    %243 = vmatprep.subr.bf16.mxu0 0
    %244 = vmatpush1.bf16.msra.mxu0 0
    %245 = vmatprep.subr.bf16.mxu0 0
    %246 = vmatpush1.bf16.msra.mxu0 0
    %247 = vmatprep.subr.bf16.mxu0 0
    %248 = vmatpush1.bf16.msra.mxu0 %v229
    %249 = vmatprep.subr.bf16.mxu0 0
    %250 = vmatpush1.bf16.msra.mxu0 %v228
    %251 = vmatprep.subr.bf16.mxu0 0
    %252 = vmatpush2.bf16.msra.mxu0 0
    %253 = vmatprep.subr.bf16.mxu0 0
    %254 = vmatpush2.bf16.msra.mxu0 0
    %255 = vmatprep.subr.bf16.mxu0 0
    %256 = vmatpush2.bf16.msra.mxu0 0
    %257 = vmatprep.subr.bf16.mxu0 0
    %258 = vmatpush2.bf16.msra.mxu0 0
    %259 = vmatprep.subr.bf16.mxu0 0
    %260 = vmatpush2.bf16.msra.mxu0 0
    %261 = vmatprep.subr.bf16.mxu0 0
    %262 = vmatpush2.bf16.msra.mxu0 0
    %263 = vmatprep.subr.bf16.mxu0 0
    %264 = vmatpush2.bf16.msra.mxu0 0
    %265 = vmatprep.subr.bf16.mxu0 0
    %266 = vmatpush2.bf16.msra.mxu0 0
    %267 = vmatprep.mubr.bf16.mxu0 0
    %268 = vmatmul.mubr.bf16.gmra.mxu0 %v233
    %v269 = vpop.f32.mrf.mxu0
    %v270 = vadd.f32 %v215, %v269
    %v271 = vpop.f32.mrf.mxu0
    %v272 = vpop.f32.mrf.mxu0
    %v273 = vpop.f32.mrf.mxu0
    %274 = vdwg.mxu0
    %v275 = vld [vmem:[%s5] sm:$0x1]
    %v277 = vlaneseq
    %v278 = vshrl.u32 %v277, 7
    %v279 = vsub.s32 0, %v278
    %v280 = vrot.slane %v275, %v279
    %v282 = vadd.f32 %v270, %v280
    %v283 = vmax.f32 %v282, 0.0
    %v284 = vld [vmem:[%s6] sm:$0x1]
    %v286 = vlaneseq
    %v287 = vshrl.u32 %v286, 7
    %v288 = vsub.s32 0, %v287
    %v289 = vrot.slane %v284, %v288
    %v291 = vmul.f32 %v283, %v289
    %v292 = vsel %vm176, %v291, 0.0
    %293 = vadd.xlane.f32.xlu0 %v292
    %v294 = vpop.xlane.xlu0 %293
    %v295 = vld [vmem:[#allocation2] sm:$0x1]
    %v297 = vlaneseq
    %v298 = vshrl.u32 %v297, 7
    %v299 = vsub.s32 0, %v298
    %v300 = vrot.slane %v295, %v299
    %v302 = vadd.f32 %v294, %v300
    %vm303 = vcmask 7168
    %304 = vst.msk [vmem:[%s8] sm:$0xff] %vm303, %v302
    // Predicated region
    $region38: #{tpu_custom_call.1} parent=1 // pred_check
      _
    $region39: #{tpu_custom_call.1} parent=1 // pred_check_branch
      %306 = sbr.rel (0) target = $region41
    $region40: #{tpu_custom_call.1} parent=1 // pred_region
      _
    $region41: #{tpu_custom_call.1} parent=1 // pred_fallthru
      _
    // Predicated region
    $region42: #{tpu_custom_call.1} parent=1 // pred_check
      _
    $region43: #{tpu_custom_call.1} parent=1 // pred_check_branch
      %308 = sbr.rel (0) target = $region45
    $region44: #{tpu_custom_call.1} parent=1 // pred_region
      _
    $region45: #{tpu_custom_call.1} parent=1 // pred_fallthru
      _
    %309 = vsyncpa [#allocation4], 1

</llo_original>
